<compile_context>
chip_gen: v6e
topology: v6e:2x2x1
jax: 0.10.0
libtpu: 0.0.40
codegen_flags: <defaults>
</compile_context>

<pallas_src>
import math

import jax
import jax.numpy as jnp
from jax.experimental import pallas as pl
from jax.experimental.pallas import tpu as pltpu

_LANE = 128
_SUBLANE = 8


def _round_up(v: int, m: int) -> int:
    return (v + m - 1) // m * m


def _apply_activation(h, activation: str):
    """Activation in f32 on the VPU/EUP.  Matches torch defaults."""
    if activation == "relu":
        return jnp.maximum(h, 0.0)
    if activation == "leakyrelu":
        return jnp.where(h >= 0.0, h, 0.01 * h)          # torch default slope
    if activation == "sigmoid":
        return jax.nn.sigmoid(h)
    if activation == "softplus":
        # torch Softplus(beta=1, threshold=20): linear above the threshold.
        return jnp.where(h > 20.0, h, jnp.log1p(jnp.exp(jnp.minimum(h, 20.0))))
    raise ValueError(f"Unrecognized activation function {activation}.")


def _make_fcnn_kernel(num_linear: int, activation: str):
    """Kernel running `num_linear` Linear layers with `activation` between them."""

    def kernel(*refs):
        x_ref = refs[0]
        o_ref = refs[-1]
        p = refs[1:-1]  # (w0, b0, w1, b1, ..., w_{L-1}, b_{L-1})

        # Running activation kept in f32; cast to bf16 only at each MXU input.
        h = x_ref[...]
        for i in range(num_linear):
            w = p[2 * i][...]          # (in_f, out_f) bf16, VMEM-resident
            b = p[2 * i + 1][...]      # (1, out_f)    f32
            h = jnp.dot(h.astype(jnp.bfloat16), w,
                        preferred_element_type=jnp.float32) + b
            if i < num_linear - 1:
                h = _apply_activation(h, activation)
        o_ref[...] = h.astype(o_ref.dtype)

    return kernel


def fcnn_forward(x, weights, biases, *, activation: str = "relu",
                 tile_b: int | None = None):
    """FCNN forward with a single pallas_call.

    Args:
      x:       (B, in_chans) float32
      weights: list of (in_f, out_f) float32 arrays (transposed vs PyTorch's (out,in))
      biases:  list of (1, out_f) float32 arrays
    Returns:
      (B, out_chans) float32
    """
    activation = activation.lower()
    B, in_chans = x.shape
    num_linear = len(weights)
    out_chans = weights[-1].shape[1]

    # Lane-dense padded feature widths per layer boundary.
    dims = [in_chans] + [w.shape[1] for w in weights]
    pdims = [_round_up(d, _LANE) for d in dims]

    # Batch tile: as big as practical; cap at 512 so huge batches keep >=2
    # grid steps (v7x megacore) and VMEM stays bounded on the 64 MiB core.
    if tile_b is None:
        tile_b = min(512, _round_up(B, _SUBLANE))
    tile_b = _round_up(tile_b, _SUBLANE)
    B_pad = _round_up(max(B, tile_b), tile_b)

    # Zero-pad the input to (B_pad, in_pad): padded rows/cols are zeros and the
    # padded weight rows are zeros too, so results are exact.
    x_p = jnp.zeros((B_pad, pdims[0]), jnp.float32).at[:B, :in_chans].set(
        x.astype(jnp.float32))

    # Pad + pre-cast parameters; build BlockSpecs (all params -> block (0, 0),
    # full-array blocks, so they stay VMEM-resident across grid steps).
    params_flat = []
    in_specs = [pl.BlockSpec((tile_b, pdims[0]), lambda i: (i, 0))]
    for li, (w, b) in enumerate(zip(weights, biases)):
        fin, fout = pdims[li], pdims[li + 1]
        w_p = jnp.zeros((fin, fout), jnp.float32).at[:w.shape[0], :w.shape[1]].set(w)
        b2 = jnp.asarray(b).reshape(1, -1)
        b_p = jnp.zeros((1, fout), jnp.float32).at[:, :b2.shape[1]].set(b2)
        params_flat.append(w_p.astype(jnp.bfloat16))  # bf16 weights
        params_flat.append(b_p)                       # f32 biases
        in_specs.append(pl.BlockSpec((fin, fout), lambda i: (0, 0)))
        in_specs.append(pl.BlockSpec((1, fout), lambda i: (0, 0)))

    out_pad = pdims[-1]
    out_spec = pl.BlockSpec((tile_b, out_pad), lambda i: (i, 0))

    kernel = _make_fcnn_kernel(num_linear, activation)

    # Advisory cost estimate for XLA's scheduler.
    flops = 2 * B_pad * sum(pdims[i] * pdims[i + 1] for i in range(num_linear))
    param_bytes = sum(int(p.size) * p.dtype.itemsize for p in params_flat)
    bytes_accessed = int(x_p.size * 4 + B_pad * out_pad * 4 + param_bytes)
    transcendentals = 0
    if activation in ("sigmoid", "softplus"):
        transcendentals = int(B_pad * sum(pdims[1:-1]))
    cost = pl.CostEstimate(flops=int(flops), transcendentals=transcendentals,
                           bytes_accessed=bytes_accessed)

    # Rough VMEM budget: double-buffered x/out tiles + params (x2 conservative)
    # + activation scratch.  Only raise the scoped limit if we actually need it.
    vmem_need = (2 * tile_b * pdims[0] * 4 + 2 * tile_b * out_pad * 4
                 + 2 * param_bytes + 4 * tile_b * max(pdims) * 4)
    compiler_kwargs = dict(dimension_semantics=("parallel",))
    if vmem_need > 32 * 1024 * 1024:
        compiler_kwargs["vmem_limit_bytes"] = int(min(vmem_need * 1.25,
                                                      100 * 1024 * 1024))

    fn = pl.pallas_call(
        kernel,
        out_shape=jax.ShapeDtypeStruct((B_pad, out_pad), jnp.float32),
        grid_spec=pltpu.PrefetchScalarGridSpec(
            num_scalar_prefetch=0,
            grid=(B_pad // tile_b,),
            in_specs=in_specs,
            out_specs=out_spec,
        ),
        compiler_params=pltpu.CompilerParams(**compiler_kwargs),
        cost_estimate=cost,
    )
    out = fn(x_p, *params_flat)
    return out[:B, :out_chans]


def init_fcnn_params(key, in_chans, out_chans, chans, num_layers):
    """Deterministic init matching nn.Linear default (U(-1/sqrt(fan_in), ...))."""
    dims = [in_chans] + [chans] * (num_layers - 1) + [out_chans]
    weights, biases = [], []
    for i in range(num_layers):
        fan_in, fan_out = dims[i], dims[i + 1]
        key, kw, kb = jax.random.split(key, 3)
        bound = 1.0 / math.sqrt(fan_in)
        # PyTorch stores W as (out, in); we keep the transposed (in, out) layout.
        w = jax.random.uniform(kw, (fan_in, fan_out), jnp.float32, -bound, bound)
        b = jax.random.uniform(kb, (1, fan_out), jnp.float32, -bound, bound)
        weights.append(w)
        biases.append(b)
    return weights, biases


def fcnn_reference(x, weights, biases, *, activation: str = "relu",
                   bf16_inputs: bool = False):
    """Pure-JAX reference; optionally mimics the kernel's bf16 matmul inputs."""
    h = x.astype(jnp.float32)
    for i, (w, b) in enumerate(zip(weights, biases)):
        if bf16_inputs:
            h = jnp.dot(h.astype(jnp.bfloat16), w.astype(jnp.bfloat16),
                        preferred_element_type=jnp.float32) + b.reshape(1, -1)
        else:
            h = h @ w + b.reshape(1, -1)
        if i < len(weights) - 1:
            h = _apply_activation(h, activation)
    return h


if __name__ == "__main__":
    # Module hyper-params (defaults: chans=128, num_layers=8, activation='ReLU')
    in_chans, out_chans, chans, num_layers = 4, 2, 128, 8
    batch = 16

    key = jax.random.PRNGKey(0)
    key, kx = jax.random.split(key)
    x = jax.random.normal(kx, (batch, in_chans), dtype=jnp.float32)

    weights, biases = init_fcnn_params(key, in_chans, out_chans, chans, num_layers)

    out = jax.block_until_ready(fcnn_forward(x, weights, biases, activation="relu"))
    assert out.shape == (batch, out_chans)

    # Tight check vs a reference that mimics the kernel's bf16-input matmuls.
    ref_bf16 = fcnn_reference(x, weights, biases, activation="relu", bf16_inputs=True)
    assert jnp.allclose(out, ref_bf16, atol=5e-3, rtol=5e-3), "mismatch vs bf16 ref"

    # Loose check vs the pure-f32 reference (bf16 inputs cost some precision).
    ref_f32 = fcnn_reference(x, weights, biases, activation="relu", bf16_inputs=False)
    assert jnp.allclose(out, ref_f32, atol=5e-2, rtol=5e-2), "mismatch vs f32 ref"

    print("KERNEL_OK")
</pallas_src>

<mosaic_0001>
module attributes {stable_mosaic.version = 11 : i64} {
  func.func @kernel(%arg0: i32, %arg1: memref<16x128xf32, #tpu.memory_space<vmem>>, %arg2: memref<128x128xbf16, #tpu.memory_space<vmem>>, %arg3: memref<1x128xf32, #tpu.memory_space<vmem>>, %arg4: memref<128x128xbf16, #tpu.memory_space<vmem>>, %arg5: memref<1x128xf32, #tpu.memory_space<vmem>>, %arg6: memref<128x128xbf16, #tpu.memory_space<vmem>>, %arg7: memref<1x128xf32, #tpu.memory_space<vmem>>, %arg8: memref<128x128xbf16, #tpu.memory_space<vmem>>, %arg9: memref<1x128xf32, #tpu.memory_space<vmem>>, %arg10: memref<128x128xbf16, #tpu.memory_space<vmem>>, %arg11: memref<1x128xf32, #tpu.memory_space<vmem>>, %arg12: memref<128x128xbf16, #tpu.memory_space<vmem>>, %arg13: memref<1x128xf32, #tpu.memory_space<vmem>>, %arg14: memref<128x128xbf16, #tpu.memory_space<vmem>>, %arg15: memref<1x128xf32, #tpu.memory_space<vmem>>, %arg16: memref<128x128xbf16, #tpu.memory_space<vmem>>, %arg17: memref<1x128xf32, #tpu.memory_space<vmem>>, %arg18: memref<16x128xf32, #tpu.memory_space<vmem>>) attributes {dimension_semantics = [#tpu.dimension_semantics<parallel>], iteration_bounds = array<i64: 1>, scalar_prefetch = 0 : i64, scratch_operands = 0 : i64, tpu.core_type = #tpu.core_type<tc>, window_params = [{transform_indices = @transform_0, window_bounds = array<i64: 16, 128>}, {pipeline_mode = #tpu.pipeline_mode<synchronous>, transform_indices = @transform_1, window_bounds = array<i64: 128, 128>}, {pipeline_mode = #tpu.pipeline_mode<synchronous>, transform_indices = @transform_2, window_bounds = array<i64: 1, 128>}, {pipeline_mode = #tpu.pipeline_mode<synchronous>, transform_indices = @transform_3, window_bounds = array<i64: 128, 128>}, {pipeline_mode = #tpu.pipeline_mode<synchronous>, transform_indices = @transform_4, window_bounds = array<i64: 1, 128>}, {pipeline_mode = #tpu.pipeline_mode<synchronous>, transform_indices = @transform_5, window_bounds = array<i64: 128, 128>}, {pipeline_mode = #tpu.pipeline_mode<synchronous>, transform_indices = @transform_6, window_bounds = array<i64: 1, 128>}, {pipeline_mode = #tpu.pipeline_mode<synchronous>, transform_indices = @transform_7, window_bounds = array<i64: 128, 128>}, {pipeline_mode = #tpu.pipeline_mode<synchronous>, transform_indices = @transform_8, window_bounds = array<i64: 1, 128>}, {pipeline_mode = #tpu.pipeline_mode<synchronous>, transform_indices = @transform_9, window_bounds = array<i64: 128, 128>}, {pipeline_mode = #tpu.pipeline_mode<synchronous>, transform_indices = @transform_10, window_bounds = array<i64: 1, 128>}, {pipeline_mode = #tpu.pipeline_mode<synchronous>, transform_indices = @transform_11, window_bounds = array<i64: 128, 128>}, {pipeline_mode = #tpu.pipeline_mode<synchronous>, transform_indices = @transform_12, window_bounds = array<i64: 1, 128>}, {pipeline_mode = #tpu.pipeline_mode<synchronous>, transform_indices = @transform_13, window_bounds = array<i64: 128, 128>}, {pipeline_mode = #tpu.pipeline_mode<synchronous>, transform_indices = @transform_14, window_bounds = array<i64: 1, 128>}, {pipeline_mode = #tpu.pipeline_mode<synchronous>, transform_indices = @transform_15, window_bounds = array<i64: 128, 128>}, {pipeline_mode = #tpu.pipeline_mode<synchronous>, transform_indices = @transform_16, window_bounds = array<i64: 1, 128>}, {transform_indices = @transform_17, window_bounds = array<i64: 16, 128>}]} {
    %c0 = arith.constant 0 : index
    %c0_0 = arith.constant 0 : index
    %0 = vector.load %arg1[%c0, %c0_0] : memref<16x128xf32, #tpu.memory_space<vmem>>, vector<16x128xf32>
    %c0_1 = arith.constant 0 : index
    %c0_2 = arith.constant 0 : index
    %1 = vector.load %arg2[%c0_1, %c0_2] : memref<128x128xbf16, #tpu.memory_space<vmem>>, vector<128x128xbf16>
    %c0_3 = arith.constant 0 : index
    %c0_4 = arith.constant 0 : index
    %2 = vector.load %arg3[%c0_3, %c0_4] : memref<1x128xf32, #tpu.memory_space<vmem>>, vector<1x128xf32>
    %3 = arith.truncf %0 : vector<16x128xf32> to vector<16x128xbf16>
    %cst = arith.constant dense<0.000000e+00> : vector<16x128xf32>
    %4 = tpu.matmul %3, %1, %cst {dimension_numbers = #tpu.dot_dimension_numbers<[1], [0], [0], [1], [0, 0, 1, 1], [], []>} : vector<16x128xbf16>, vector<128x128xbf16>, vector<16x128xf32> -> vector<16x128xf32>
    %5 = vector.broadcast %2 : vector<1x128xf32> to vector<16x128xf32>
    %6 = arith.addf %4, %5 : vector<16x128xf32>
    %cst_5 = arith.constant 0.000000e+00 : f32
    %7 = vector.broadcast %cst_5 : f32 to vector<16x128xf32>
    %8 = arith.maximumf %6, %7 : vector<16x128xf32>
    %c0_6 = arith.constant 0 : index
    %c0_7 = arith.constant 0 : index
    %9 = vector.load %arg4[%c0_6, %c0_7] : memref<128x128xbf16, #tpu.memory_space<vmem>>, vector<128x128xbf16>
    %c0_8 = arith.constant 0 : index
    %c0_9 = arith.constant 0 : index
    %10 = vector.load %arg5[%c0_8, %c0_9] : memref<1x128xf32, #tpu.memory_space<vmem>>, vector<1x128xf32>
    %11 = arith.truncf %8 : vector<16x128xf32> to vector<16x128xbf16>
    %cst_10 = arith.constant dense<0.000000e+00> : vector<16x128xf32>
    %12 = tpu.matmul %11, %9, %cst_10 {dimension_numbers = #tpu.dot_dimension_numbers<[1], [0], [0], [1], [0, 0, 1, 1], [], []>} : vector<16x128xbf16>, vector<128x128xbf16>, vector<16x128xf32> -> vector<16x128xf32>
    %13 = vector.broadcast %10 : vector<1x128xf32> to vector<16x128xf32>
    %14 = arith.addf %12, %13 : vector<16x128xf32>
    %cst_11 = arith.constant 0.000000e+00 : f32
    %15 = vector.broadcast %cst_11 : f32 to vector<16x128xf32>
    %16 = arith.maximumf %14, %15 : vector<16x128xf32>
    %c0_12 = arith.constant 0 : index
    %c0_13 = arith.constant 0 : index
    %17 = vector.load %arg6[%c0_12, %c0_13] : memref<128x128xbf16, #tpu.memory_space<vmem>>, vector<128x128xbf16>
    %c0_14 = arith.constant 0 : index
    %c0_15 = arith.constant 0 : index
    %18 = vector.load %arg7[%c0_14, %c0_15] : memref<1x128xf32, #tpu.memory_space<vmem>>, vector<1x128xf32>
    %19 = arith.truncf %16 : vector<16x128xf32> to vector<16x128xbf16>
    %cst_16 = arith.constant dense<0.000000e+00> : vector<16x128xf32>
    %20 = tpu.matmul %19, %17, %cst_16 {dimension_numbers = #tpu.dot_dimension_numbers<[1], [0], [0], [1], [0, 0, 1, 1], [], []>} : vector<16x128xbf16>, vector<128x128xbf16>, vector<16x128xf32> -> vector<16x128xf32>
    %21 = vector.broadcast %18 : vector<1x128xf32> to vector<16x128xf32>
    %22 = arith.addf %20, %21 : vector<16x128xf32>
    %cst_17 = arith.constant 0.000000e+00 : f32
    %23 = vector.broadcast %cst_17 : f32 to vector<16x128xf32>
    %24 = arith.maximumf %22, %23 : vector<16x128xf32>
    %c0_18 = arith.constant 0 : index
    %c0_19 = arith.constant 0 : index
    %25 = vector.load %arg8[%c0_18, %c0_19] : memref<128x128xbf16, #tpu.memory_space<vmem>>, vector<128x128xbf16>
    %c0_20 = arith.constant 0 : index
    %c0_21 = arith.constant 0 : index
    %26 = vector.load %arg9[%c0_20, %c0_21] : memref<1x128xf32, #tpu.memory_space<vmem>>, vector<1x128xf32>
    %27 = arith.truncf %24 : vector<16x128xf32> to vector<16x128xbf16>
    %cst_22 = arith.constant dense<0.000000e+00> : vector<16x128xf32>
    %28 = tpu.matmul %27, %25, %cst_22 {dimension_numbers = #tpu.dot_dimension_numbers<[1], [0], [0], [1], [0, 0, 1, 1], [], []>} : vector<16x128xbf16>, vector<128x128xbf16>, vector<16x128xf32> -> vector<16x128xf32>
    %29 = vector.broadcast %26 : vector<1x128xf32> to vector<16x128xf32>
    %30 = arith.addf %28, %29 : vector<16x128xf32>
    %cst_23 = arith.constant 0.000000e+00 : f32
    %31 = vector.broadcast %cst_23 : f32 to vector<16x128xf32>
    %32 = arith.maximumf %30, %31 : vector<16x128xf32>
    %c0_24 = arith.constant 0 : index
    %c0_25 = arith.constant 0 : index
    %33 = vector.load %arg10[%c0_24, %c0_25] : memref<128x128xbf16, #tpu.memory_space<vmem>>, vector<128x128xbf16>
    %c0_26 = arith.constant 0 : index
    %c0_27 = arith.constant 0 : index
    %34 = vector.load %arg11[%c0_26, %c0_27] : memref<1x128xf32, #tpu.memory_space<vmem>>, vector<1x128xf32>
    %35 = arith.truncf %32 : vector<16x128xf32> to vector<16x128xbf16>
    %cst_28 = arith.constant dense<0.000000e+00> : vector<16x128xf32>
    %36 = tpu.matmul %35, %33, %cst_28 {dimension_numbers = #tpu.dot_dimension_numbers<[1], [0], [0], [1], [0, 0, 1, 1], [], []>} : vector<16x128xbf16>, vector<128x128xbf16>, vector<16x128xf32> -> vector<16x128xf32>
    %37 = vector.broadcast %34 : vector<1x128xf32> to vector<16x128xf32>
    %38 = arith.addf %36, %37 : vector<16x128xf32>
    %cst_29 = arith.constant 0.000000e+00 : f32
    %39 = vector.broadcast %cst_29 : f32 to vector<16x128xf32>
    %40 = arith.maximumf %38, %39 : vector<16x128xf32>
    %c0_30 = arith.constant 0 : index
    %c0_31 = arith.constant 0 : index
    %41 = vector.load %arg12[%c0_30, %c0_31] : memref<128x128xbf16, #tpu.memory_space<vmem>>, vector<128x128xbf16>
    %c0_32 = arith.constant 0 : index
    %c0_33 = arith.constant 0 : index
    %42 = vector.load %arg13[%c0_32, %c0_33] : memref<1x128xf32, #tpu.memory_space<vmem>>, vector<1x128xf32>
    %43 = arith.truncf %40 : vector<16x128xf32> to vector<16x128xbf16>
    %cst_34 = arith.constant dense<0.000000e+00> : vector<16x128xf32>
    %44 = tpu.matmul %43, %41, %cst_34 {dimension_numbers = #tpu.dot_dimension_numbers<[1], [0], [0], [1], [0, 0, 1, 1], [], []>} : vector<16x128xbf16>, vector<128x128xbf16>, vector<16x128xf32> -> vector<16x128xf32>
    %45 = vector.broadcast %42 : vector<1x128xf32> to vector<16x128xf32>
    %46 = arith.addf %44, %45 : vector<16x128xf32>
    %cst_35 = arith.constant 0.000000e+00 : f32
    %47 = vector.broadcast %cst_35 : f32 to vector<16x128xf32>
    %48 = arith.maximumf %46, %47 : vector<16x128xf32>
    %c0_36 = arith.constant 0 : index
    %c0_37 = arith.constant 0 : index
    %49 = vector.load %arg14[%c0_36, %c0_37] : memref<128x128xbf16, #tpu.memory_space<vmem>>, vector<128x128xbf16>
    %c0_38 = arith.constant 0 : index
    %c0_39 = arith.constant 0 : index
    %50 = vector.load %arg15[%c0_38, %c0_39] : memref<1x128xf32, #tpu.memory_space<vmem>>, vector<1x128xf32>
    %51 = arith.truncf %48 : vector<16x128xf32> to vector<16x128xbf16>
    %cst_40 = arith.constant dense<0.000000e+00> : vector<16x128xf32>
    %52 = tpu.matmul %51, %49, %cst_40 {dimension_numbers = #tpu.dot_dimension_numbers<[1], [0], [0], [1], [0, 0, 1, 1], [], []>} : vector<16x128xbf16>, vector<128x128xbf16>, vector<16x128xf32> -> vector<16x128xf32>
    %53 = vector.broadcast %50 : vector<1x128xf32> to vector<16x128xf32>
    %54 = arith.addf %52, %53 : vector<16x128xf32>
    %cst_41 = arith.constant 0.000000e+00 : f32
    %55 = vector.broadcast %cst_41 : f32 to vector<16x128xf32>
    %56 = arith.maximumf %54, %55 : vector<16x128xf32>
    %c0_42 = arith.constant 0 : index
    %c0_43 = arith.constant 0 : index
    %57 = vector.load %arg16[%c0_42, %c0_43] : memref<128x128xbf16, #tpu.memory_space<vmem>>, vector<128x128xbf16>
    %c0_44 = arith.constant 0 : index
    %c0_45 = arith.constant 0 : index
    %58 = vector.load %arg17[%c0_44, %c0_45] : memref<1x128xf32, #tpu.memory_space<vmem>>, vector<1x128xf32>
    %59 = arith.truncf %56 : vector<16x128xf32> to vector<16x128xbf16>
    %cst_46 = arith.constant dense<0.000000e+00> : vector<16x128xf32>
    %60 = tpu.matmul %59, %57, %cst_46 {dimension_numbers = #tpu.dot_dimension_numbers<[1], [0], [0], [1], [0, 0, 1, 1], [], []>} : vector<16x128xbf16>, vector<128x128xbf16>, vector<16x128xf32> -> vector<16x128xf32>
    %61 = vector.broadcast %58 : vector<1x128xf32> to vector<16x128xf32>
    %62 = arith.addf %60, %61 : vector<16x128xf32>
    %c0_47 = arith.constant 0 : index
    %c0_48 = arith.constant 0 : index
    %63 = vector.load %arg18[%c0_47, %c0_48] : memref<16x128xf32, #tpu.memory_space<vmem>>, vector<16x128xf32>
    tpu.vector_store %arg18[%c0_47, %c0_48], %62 {strides = array<i32>} : memref<16x128xf32, #tpu.memory_space<vmem>>, vector<16x128xf32>,
    return
  }
  func.func @transform_0(%arg0: i32) -> (i32, i32) {
    %c0_i32 = arith.constant 0 : i32
    %c0_i32_0 = arith.constant 0 : i32
    return %arg0, %c0_i32 : i32, i32
  }
  func.func @transform_1(%arg0: i32) -> (i32, i32) {
    %c0_i32 = arith.constant 0 : i32
    %c0_i32_0 = arith.constant 0 : i32
    %c0_i32_1 = arith.constant 0 : i32
    return %c0_i32, %c0_i32_0 : i32, i32
  }
  func.func @transform_2(%arg0: i32) -> (i32, i32) {
    %c0_i32 = arith.constant 0 : i32
    %c0_i32_0 = arith.constant 0 : i32
    %c0_i32_1 = arith.constant 0 : i32
    return %c0_i32, %c0_i32_0 : i32, i32
  }
  func.func @transform_3(%arg0: i32) -> (i32, i32) {
    %c0_i32 = arith.constant 0 : i32
    %c0_i32_0 = arith.constant 0 : i32
    %c0_i32_1 = arith.constant 0 : i32
    return %c0_i32, %c0_i32_0 : i32, i32
  }
  func.func @transform_4(%arg0: i32) -> (i32, i32) {
    %c0_i32 = arith.constant 0 : i32
    %c0_i32_0 = arith.constant 0 : i32
    %c0_i32_1 = arith.constant 0 : i32
    return %c0_i32, %c0_i32_0 : i32, i32
  }
  func.func @transform_5(%arg0: i32) -> (i32, i32) {
    %c0_i32 = arith.constant 0 : i32
    %c0_i32_0 = arith.constant 0 : i32
    %c0_i32_1 = arith.constant 0 : i32
    return %c0_i32, %c0_i32_0 : i32, i32
  }
  func.func @transform_6(%arg0: i32) -> (i32, i32) {
    %c0_i32 = arith.constant 0 : i32
    %c0_i32_0 = arith.constant 0 : i32
    %c0_i32_1 = arith.constant 0 : i32
    return %c0_i32, %c0_i32_0 : i32, i32
  }
  func.func @transform_7(%arg0: i32) -> (i32, i32) {
    %c0_i32 = arith.constant 0 : i32
    %c0_i32_0 = arith.constant 0 : i32
    %c0_i32_1 = arith.constant 0 : i32
    return %c0_i32, %c0_i32_0 : i32, i32
  }
  func.func @transform_8(%arg0: i32) -> (i32, i32) {
    %c0_i32 = arith.constant 0 : i32
    %c0_i32_0 = arith.constant 0 : i32
    %c0_i32_1 = arith.constant 0 : i32
    return %c0_i32, %c0_i32_0 : i32, i32
  }
  func.func @transform_9(%arg0: i32) -> (i32, i32) {
    %c0_i32 = arith.constant 0 : i32
    %c0_i32_0 = arith.constant 0 : i32
    %c0_i32_1 = arith.constant 0 : i32
    return %c0_i32, %c0_i32_0 : i32, i32
  }
  func.func @transform_10(%arg0: i32) -> (i32, i32) {
    %c0_i32 = arith.constant 0 : i32
    %c0_i32_0 = arith.constant 0 : i32
    %c0_i32_1 = arith.constant 0 : i32
    return %c0_i32, %c0_i32_0 : i32, i32
  }
  func.func @transform_11(%arg0: i32) -> (i32, i32) {
    %c0_i32 = arith.constant 0 : i32
    %c0_i32_0 = arith.constant 0 : i32
    %c0_i32_1 = arith.constant 0 : i32
    return %c0_i32, %c0_i32_0 : i32, i32
  }
  func.func @transform_12(%arg0: i32) -> (i32, i32) {
    %c0_i32 = arith.constant 0 : i32
    %c0_i32_0 = arith.constant 0 : i32
    %c0_i32_1 = arith.constant 0 : i32
    return %c0_i32, %c0_i32_0 : i32, i32
  }
  func.func @transform_13(%arg0: i32) -> (i32, i32) {
    %c0_i32 = arith.constant 0 : i32
    %c0_i32_0 = arith.constant 0 : i32
    %c0_i32_1 = arith.constant 0 : i32
    return %c0_i32, %c0_i32_0 : i32, i32
  }
  func.func @transform_14(%arg0: i32) -> (i32, i32) {
    %c0_i32 = arith.constant 0 : i32
    %c0_i32_0 = arith.constant 0 : i32
    %c0_i32_1 = arith.constant 0 : i32
    return %c0_i32, %c0_i32_0 : i32, i32
  }
  func.func @transform_15(%arg0: i32) -> (i32, i32) {
    %c0_i32 = arith.constant 0 : i32
    %c0_i32_0 = arith.constant 0 : i32
    %c0_i32_1 = arith.constant 0 : i32
    return %c0_i32, %c0_i32_0 : i32, i32
  }
  func.func @transform_16(%arg0: i32) -> (i32, i32) {
    %c0_i32 = arith.constant 0 : i32
    %c0_i32_0 = arith.constant 0 : i32
    %c0_i32_1 = arith.constant 0 : i32
    return %c0_i32, %c0_i32_0 : i32, i32
  }
  func.func @transform_17(%arg0: i32) -> (i32, i32) {
    %c0_i32 = arith.constant 0 : i32
    %c0_i32_0 = arith.constant 0 : i32
    return %arg0, %c0_i32 : i32, i32
  }
}

</mosaic_0001>

<llo_original>
// kernel: tpu_custom_call.1
$region0: #{tpu_custom_call.1}
  #allocation0 [shape = 'u32[]', space=smem, size = 0x4, offset = 0x4, fixed_abs, tag = 'smem constant byte address 0x4 - core index']
  #allocation1 [shape = 'u32[144,128]{1,0:T(1,128)}', space=vmem, size = 0x12000, scoped, tag = 'internal scratch']
  %s0 = inlined_call_operand.hbm [shape: f32[16,128], index: 0, kind: input, shape index: {}]
  %s1 = inlined_call_operand.hbm [shape: bf16[128,128], index: 1, kind: input, shape index: {}]
  %s2 = inlined_call_operand.vmem [shape: f32[1,128], index: 2, kind: input, shape index: {}]
  %s3 = inlined_call_operand.hbm [shape: bf16[128,128], index: 3, kind: input, shape index: {}]
  %s4 = inlined_call_operand.vmem [shape: f32[1,128], index: 4, kind: input, shape index: {}]
  %s5 = inlined_call_operand.hbm [shape: bf16[128,128], index: 5, kind: input, shape index: {}]
  %s6 = inlined_call_operand.vmem [shape: f32[1,128], index: 6, kind: input, shape index: {}]
  %s7 = inlined_call_operand.hbm [shape: bf16[128,128], index: 7, kind: input, shape index: {}]
  %s8 = inlined_call_operand.vmem [shape: f32[1,128], index: 8, kind: input, shape index: {}]
  %s9 = inlined_call_operand.hbm [shape: bf16[128,128], index: 9, kind: input, shape index: {}]
  %s10 = inlined_call_operand.vmem [shape: f32[1,128], index: 10, kind: input, shape index: {}]
  %s11 = inlined_call_operand.hbm [shape: bf16[128,128], index: 11, kind: input, shape index: {}]
  %s12 = inlined_call_operand.vmem [shape: f32[1,128], index: 12, kind: input, shape index: {}]
  %s13 = inlined_call_operand.hbm [shape: bf16[128,128], index: 13, kind: input, shape index: {}]
  %s14 = inlined_call_operand.vmem [shape: f32[1,128], index: 14, kind: input, shape index: {}]
  %s15 = inlined_call_operand.hbm [shape: bf16[128,128], index: 15, kind: input, shape index: {}]
  %s16 = inlined_call_operand.vmem [shape: f32[1,128], index: 16, kind: input, shape index: {}]
  %s17 = inlined_call_operand.hbm [shape: f32[16,128], index: 17, kind: output, shape index: {}]
  %s18 = sld [smem:[#allocation0]]
  $region114: #{tpu_custom_call.1} parent=0
    _
  %s20 = ssub.s32 1, %s18
  %s21 = scalar_select 0, %s20, %s18
  $region1: #{tpu_custom_call.1} parent=0
    #allocation2 [shape = 'u8[8192]{0}', space=vmem, size = 0x2000, scoped, tag = 'input window, operand 0, single buffered']
    #allocation3 [shape = 's32[1]{0}', space=sflag, size = 0x4, scoped, tag = 'scoped memory for tpu_custom_call.1']
    #allocation4 [shape = 's32[1]{0}', space=sflag, size = 0x4, scoped, tag = 'scoped memory for tpu_custom_call.1']
    #allocation5 [shape = 'u8[32768]{0}', space=vmem, size = 0x8000, scoped, tag = 'input window, operand 1, single buffered']
    #allocation6 [shape = 's32[1]{0}', space=sflag, size = 0x4, scoped, tag = 'scoped memory for tpu_custom_call.1']
    #allocation7 [shape = 'u8[32768]{0}', space=vmem, size = 0x8000, scoped, tag = 'input window, operand 3, single buffered']
    #allocation8 [shape = 'u8[32768]{0}', space=vmem, size = 0x8000, scoped, tag = 'input window, operand 5, single buffered']
    #allocation9 [shape = 's32[1]{0}', space=sflag, size = 0x4, scoped, tag = 'scoped memory for tpu_custom_call.1']
    #allocation10 [shape = 'u8[32768]{0}', space=vmem, size = 0x8000, scoped, tag = 'input window, operand 7, single buffered']
    #allocation11 [shape = 'u8[32768]{0}', space=vmem, size = 0x8000, scoped, tag = 'input window, operand 9, single buffered']
    #allocation12 [shape = 's32[1]{0}', space=sflag, size = 0x4, scoped, tag = 'scoped memory for tpu_custom_call.1']
    #allocation13 [shape = 'u8[32768]{0}', space=vmem, size = 0x8000, scoped, tag = 'input window, operand 11, single buffered']
    #allocation14 [shape = 'u8[32768]{0}', space=vmem, size = 0x8000, scoped, tag = 'input window, operand 13, single buffered']
    #allocation15 [shape = 's32[1]{0}', space=sflag, size = 0x4, scoped, tag = 'scoped memory for tpu_custom_call.1']
    #allocation16 [shape = 'u8[32768]{0}', space=vmem, size = 0x8000, scoped, tag = 'input window, operand 15, single buffered']
    #allocation17 [shape = 'u8[8192]{0}', space=vmem, size = 0x2000, scoped, tag = 'output window, operand 0, single buffered']
    %22 = vsyncpa [#allocation3], 0
    %23 = vsyncpa [#allocation6], 0
    %24 = vsyncpa [#allocation9], 0
    %25 = vsyncpa [#allocation12], 0
    %26 = vsyncpa [#allocation15], 0
    %27 = vsyncpa [#allocation4], 0
    // Predicated region
    $region2: #{tpu_custom_call.1} parent=1 // pred_check
      _
    $region3: #{tpu_custom_call.1} parent=1 // pred_check_branch
      %29 = sbr.rel (0) target = $region5
    $region4: #{tpu_custom_call.1} parent=1 // pred_region
      %s31 = ssub.s32 256, 256
      %32 = vsyncadd [#allocation3], %s31
      %s33 = sshll.u32 [#allocation2], 4
      %s34 = int_to_ptr.vmem [resolvable:$true] %s33
      %39 = dma.hbm_to_vmem [thread:$0]  %s0, 256, %s34, [#allocation3], 128, 128, 8
    $region5: #{tpu_custom_call.1} parent=1 // pred_fallthru
      _
    // Predicated region
    $region6: #{tpu_custom_call.1} parent=1 // pred_check
      _
    $region7: #{tpu_custom_call.1} parent=1 // pred_check_branch
      %41 = sbr.rel (0) target = $region9
    $region8: #{tpu_custom_call.1} parent=1 // pred_region
      %s43 = ssub.s32 1024, 1024
      %44 = vsyncadd [#allocation6], %s43
      %s45 = sshll.u32 [#allocation5], 4
      %s46 = int_to_ptr.vmem [resolvable:$true] %s45
      %51 = dma.hbm_to_vmem [thread:$0]  %s1, 1024, %s46, [#allocation6], 64, 64, 4
    $region9: #{tpu_custom_call.1} parent=1 // pred_fallthru
      _
    // Predicated region
    $region10: #{tpu_custom_call.1} parent=1 // pred_check
      _
    $region11: #{tpu_custom_call.1} parent=1 // pred_check_branch
      %53 = sbr.rel (0) target = $region13
    $region12: #{tpu_custom_call.1} parent=1 // pred_region
      _
    $region13: #{tpu_custom_call.1} parent=1 // pred_fallthru
      _
    // Predicated region
    $region14: #{tpu_custom_call.1} parent=1 // pred_check
      _
    $region15: #{tpu_custom_call.1} parent=1 // pred_check_branch
      %55 = sbr.rel (0) target = $region17
    $region16: #{tpu_custom_call.1} parent=1 // pred_region
      %s57 = ssub.s32 1024, 1024
      %58 = vsyncadd [#allocation6], %s57
      %s59 = sshll.u32 [#allocation7], 4
      %s60 = int_to_ptr.vmem [resolvable:$true] %s59
      %65 = dma.hbm_to_vmem [thread:$0]  %s3, 1024, %s60, [#allocation6], 64, 64, 4
    $region17: #{tpu_custom_call.1} parent=1 // pred_fallthru
      _
    // Predicated region
    $region18: #{tpu_custom_call.1} parent=1 // pred_check
      _
    $region19: #{tpu_custom_call.1} parent=1 // pred_check_branch
      %67 = sbr.rel (0) target = $region21
    $region20: #{tpu_custom_call.1} parent=1 // pred_region
      _
    $region21: #{tpu_custom_call.1} parent=1 // pred_fallthru
      _
    // Predicated region
    $region22: #{tpu_custom_call.1} parent=1 // pred_check
      _
    $region23: #{tpu_custom_call.1} parent=1 // pred_check_branch
      %69 = sbr.rel (0) target = $region25
    $region24: #{tpu_custom_call.1} parent=1 // pred_region
      %s71 = ssub.s32 1024, 1024
      %72 = vsyncadd [#allocation9], %s71
      %s73 = sshll.u32 [#allocation8], 4
      %s74 = int_to_ptr.vmem [resolvable:$true] %s73
      %79 = dma.hbm_to_vmem [thread:$0]  %s5, 1024, %s74, [#allocation9], 64, 64, 4
    $region25: #{tpu_custom_call.1} parent=1 // pred_fallthru
      _
    // Predicated region
    $region26: #{tpu_custom_call.1} parent=1 // pred_check
      _
    $region27: #{tpu_custom_call.1} parent=1 // pred_check_branch
      %81 = sbr.rel (0) target = $region29
    $region28: #{tpu_custom_call.1} parent=1 // pred_region
      _
    $region29: #{tpu_custom_call.1} parent=1 // pred_fallthru
      _
    // Predicated region
    $region30: #{tpu_custom_call.1} parent=1 // pred_check
      _
    $region31: #{tpu_custom_call.1} parent=1 // pred_check_branch
      %83 = sbr.rel (0) target = $region33
    $region32: #{tpu_custom_call.1} parent=1 // pred_region
      %s85 = ssub.s32 1024, 1024
      %86 = vsyncadd [#allocation9], %s85
      %s87 = sshll.u32 [#allocation10], 4
      %s88 = int_to_ptr.vmem [resolvable:$true] %s87
      %93 = dma.hbm_to_vmem [thread:$0]  %s7, 1024, %s88, [#allocation9], 64, 64, 4
    $region33: #{tpu_custom_call.1} parent=1 // pred_fallthru
      _
    // Predicated region
    $region34: #{tpu_custom_call.1} parent=1 // pred_check
      _
    $region35: #{tpu_custom_call.1} parent=1 // pred_check_branch
      %95 = sbr.rel (0) target = $region37
    $region36: #{tpu_custom_call.1} parent=1 // pred_region
      _
    $region37: #{tpu_custom_call.1} parent=1 // pred_fallthru
      _
    // Predicated region
    $region38: #{tpu_custom_call.1} parent=1 // pred_check
      _
    $region39: #{tpu_custom_call.1} parent=1 // pred_check_branch
      %97 = sbr.rel (0) target = $region41
    $region40: #{tpu_custom_call.1} parent=1 // pred_region
      %s99 = ssub.s32 1024, 1024
      %100 = vsyncadd [#allocation12], %s99
      %s101 = sshll.u32 [#allocation11], 4
      %s102 = int_to_ptr.vmem [resolvable:$true] %s101
      %107 = dma.hbm_to_vmem [thread:$0]  %s9, 1024, %s102, [#allocation12], 64, 64, 4
    $region41: #{tpu_custom_call.1} parent=1 // pred_fallthru
      _
    // Predicated region
    $region42: #{tpu_custom_call.1} parent=1 // pred_check
      _
    $region43: #{tpu_custom_call.1} parent=1 // pred_check_branch
      %109 = sbr.rel (0) target = $region45
    $region44: #{tpu_custom_call.1} parent=1 // pred_region
      _
    $region45: #{tpu_custom_call.1} parent=1 // pred_fallthru
      _
    // Predicated region
    $region46: #{tpu_custom_call.1} parent=1 // pred_check
      _
    $region47: #{tpu_custom_call.1} parent=1 // pred_check_branch
      %111 = sbr.rel (0) target = $region49
    $region48: #{tpu_custom_call.1} parent=1 // pred_region
      %s113 = ssub.s32 1024, 1024
      %114 = vsyncadd [#allocation12], %s113
      %s115 = sshll.u32 [#allocation13], 4
      %s116 = int_to_ptr.vmem [resolvable:$true] %s115
      %121 = dma.hbm_to_vmem [thread:$0]  %s11, 1024, %s116, [#allocation12], 64, 64, 4
    $region49: #{tpu_custom_call.1} parent=1 // pred_fallthru
      _
    // Predicated region
    $region50: #{tpu_custom_call.1} parent=1 // pred_check
      _
    $region51: #{tpu_custom_call.1} parent=1 // pred_check_branch
      %123 = sbr.rel (0) target = $region53
    $region52: #{tpu_custom_call.1} parent=1 // pred_region
      _
    $region53: #{tpu_custom_call.1} parent=1 // pred_fallthru
      _
    // Predicated region
    $region54: #{tpu_custom_call.1} parent=1 // pred_check
      _
    $region55: #{tpu_custom_call.1} parent=1 // pred_check_branch
      %125 = sbr.rel (0) target = $region57
    $region56: #{tpu_custom_call.1} parent=1 // pred_region
      %s127 = ssub.s32 1024, 1024
      %128 = vsyncadd [#allocation15], %s127
      %s129 = sshll.u32 [#allocation14], 4
      %s130 = int_to_ptr.vmem [resolvable:$true] %s129
      %135 = dma.hbm_to_vmem [thread:$0]  %s13, 1024, %s130, [#allocation15], 64, 64, 4
    $region57: #{tpu_custom_call.1} parent=1 // pred_fallthru
      _
    // Predicated region
    $region58: #{tpu_custom_call.1} parent=1 // pred_check
      _
    $region59: #{tpu_custom_call.1} parent=1 // pred_check_branch
      %137 = sbr.rel (0) target = $region61
    $region60: #{tpu_custom_call.1} parent=1 // pred_region
      _
    $region61: #{tpu_custom_call.1} parent=1 // pred_fallthru
      _
    // Predicated region
    $region62: #{tpu_custom_call.1} parent=1 // pred_check
      _
    $region63: #{tpu_custom_call.1} parent=1 // pred_check_branch
      %139 = sbr.rel (0) target = $region65
    $region64: #{tpu_custom_call.1} parent=1 // pred_region
      %s141 = ssub.s32 1024, 1024
      %142 = vsyncadd [#allocation15], %s141
      %s143 = sshll.u32 [#allocation16], 4
      %s144 = int_to_ptr.vmem [resolvable:$true] %s143
      %149 = dma.hbm_to_vmem [thread:$0]  %s15, 1024, %s144, [#allocation15], 64, 64, 4
    $region65: #{tpu_custom_call.1} parent=1 // pred_fallthru
      _
    // Predicated region
    $region66: #{tpu_custom_call.1} parent=1 // pred_check
      _
    $region67: #{tpu_custom_call.1} parent=1 // pred_check_branch
      %151 = sbr.rel (0) target = $region69
    $region68: #{tpu_custom_call.1} parent=1 // pred_region
      _
    $region69: #{tpu_custom_call.1} parent=1 // pred_fallthru
      _
    // Predicated region
    $region70: #{tpu_custom_call.1} parent=1 // pred_check
      _
    $region71: #{tpu_custom_call.1} parent=1 // pred_check_branch
      %153 = sbr.rel (0) target = $region73
    $region72: #{tpu_custom_call.1} parent=1 // pred_region
      %154 = dma.done [#allocation3], 256
    $region73: #{tpu_custom_call.1} parent=1 // pred_fallthru
      _
    // Predicated region
    $region74: #{tpu_custom_call.1} parent=1 // pred_check
      _
    $region75: #{tpu_custom_call.1} parent=1 // pred_check_branch
      %156 = sbr.rel (0) target = $region77
    $region76: #{tpu_custom_call.1} parent=1 // pred_region
      %157 = dma.done [#allocation6], 1024
    $region77: #{tpu_custom_call.1} parent=1 // pred_fallthru
      _
    // Predicated region
    $region78: #{tpu_custom_call.1} parent=1 // pred_check
      _
    $region79: #{tpu_custom_call.1} parent=1 // pred_check_branch
      %159 = sbr.rel (0) target = $region81
    $region80: #{tpu_custom_call.1} parent=1 // pred_region
      %160 = dma.done [#allocation6], 1024
    $region81: #{tpu_custom_call.1} parent=1 // pred_fallthru
      _
    // Predicated region
    $region82: #{tpu_custom_call.1} parent=1 // pred_check
      _
    $region83: #{tpu_custom_call.1} parent=1 // pred_check_branch
      %162 = sbr.rel (0) target = $region85
    $region84: #{tpu_custom_call.1} parent=1 // pred_region
      %163 = dma.done [#allocation9], 1024
    $region85: #{tpu_custom_call.1} parent=1 // pred_fallthru
      _
    // Predicated region
    $region86: #{tpu_custom_call.1} parent=1 // pred_check
      _
    $region87: #{tpu_custom_call.1} parent=1 // pred_check_branch
      %165 = sbr.rel (0) target = $region89
    $region88: #{tpu_custom_call.1} parent=1 // pred_region
      %166 = dma.done [#allocation9], 1024
    $region89: #{tpu_custom_call.1} parent=1 // pred_fallthru
      _
    // Predicated region
    $region90: #{tpu_custom_call.1} parent=1 // pred_check
      _
    $region91: #{tpu_custom_call.1} parent=1 // pred_check_branch
      %168 = sbr.rel (0) target = $region93
    $region92: #{tpu_custom_call.1} parent=1 // pred_region
      %169 = dma.done [#allocation12], 1024
    $region93: #{tpu_custom_call.1} parent=1 // pred_fallthru
      _
    // Predicated region
    $region94: #{tpu_custom_call.1} parent=1 // pred_check
      _
    $region95: #{tpu_custom_call.1} parent=1 // pred_check_branch
      %171 = sbr.rel (0) target = $region97
    $region96: #{tpu_custom_call.1} parent=1 // pred_region
      %172 = dma.done [#allocation12], 1024
    $region97: #{tpu_custom_call.1} parent=1 // pred_fallthru
      _
    // Predicated region
    $region98: #{tpu_custom_call.1} parent=1 // pred_check
      _
    $region99: #{tpu_custom_call.1} parent=1 // pred_check_branch
      %174 = sbr.rel (0) target = $region101
    $region100: #{tpu_custom_call.1} parent=1 // pred_region
      %175 = dma.done [#allocation15], 1024
    $region101: #{tpu_custom_call.1} parent=1 // pred_fallthru
      _
    // Predicated region
    $region102: #{tpu_custom_call.1} parent=1 // pred_check
      _
    $region103: #{tpu_custom_call.1} parent=1 // pred_check_branch
      %177 = sbr.rel (0) target = $region105
    $region104: #{tpu_custom_call.1} parent=1 // pred_region
      %178 = dma.done [#allocation15], 1024
    $region105: #{tpu_custom_call.1} parent=1 // pred_fallthru
      _
    %v180 = vld [vmem:[#allocation2] sm:$0xff]
    %v181 = vld [vmem:[#allocation2 + $0x8] sm:$0xff]
    %v182 = vld [vmem:[#allocation5] sm:$0xf]
    %v183 = vld [vmem:[#allocation5 + $0x4] sm:$0xf]
    %v184 = vld [vmem:[#allocation5 + $0x8] sm:$0xf]
    %v185 = vld [vmem:[#allocation5 + $0xc] sm:$0xf]
    %v186 = vld [vmem:[#allocation5 + $0x10] sm:$0xf]
    %v187 = vld [vmem:[#allocation5 + $0x14] sm:$0xf]
    %v188 = vld [vmem:[#allocation5 + $0x18] sm:$0xf]
    %v189 = vld [vmem:[#allocation5 + $0x1c] sm:$0xf]
    %v190 = vld [vmem:[#allocation5 + $0x20] sm:$0xf]
    %v191 = vld [vmem:[#allocation5 + $0x24] sm:$0xf]
    %v192 = vld [vmem:[#allocation5 + $0x28] sm:$0xf]
    %v193 = vld [vmem:[#allocation5 + $0x2c] sm:$0xf]
    %v194 = vld [vmem:[#allocation5 + $0x30] sm:$0xf]
    %v195 = vld [vmem:[#allocation5 + $0x34] sm:$0xf]
    %v196 = vld [vmem:[#allocation5 + $0x38] sm:$0xf]
    %v197 = vld [vmem:[#allocation5 + $0x3c] sm:$0xf]
    %v198 = vld [vmem:[%s2] sm:$0x1]
    %v199 = vpack.c.bf16 %v181, %v180
    %v201 = vlaneseq
    %v202 = vshrl.u32 %v201, 7
    %v203 = vsub.s32 0, %v202
    %v204 = vrot.slane %v198, %v203
    %v222 = vunpack.c.l.b16 %v182
    %v223 = vunpack.c.l.b16 %v183
    %v224 = vunpack.c.l.b16 %v184
    %v225 = vunpack.c.l.b16 %v185
    %v226 = vunpack.c.l.b16 %v186
    %v227 = vunpack.c.l.b16 %v187
    %v228 = vunpack.c.l.b16 %v188
    %v229 = vunpack.c.l.b16 %v189
    %v230 = vunpack.c.l.b16 %v190
    %v231 = vunpack.c.l.b16 %v191
    %v232 = vunpack.c.l.b16 %v192
    %v233 = vunpack.c.l.b16 %v193
    %v234 = vunpack.c.l.b16 %v194
    %v235 = vunpack.c.l.b16 %v195
    %v236 = vunpack.c.l.b16 %v196
    %v237 = vunpack.c.l.b16 %v197
    %v238 = vpack.c.b16 %v223, %v222
    %v239 = vpack.c.b16 %v225, %v224
    %v240 = vpack.c.b16 %v227, %v226
    %v241 = vpack.c.b16 %v229, %v228
    %v242 = vpack.c.b16 %v231, %v230
    %v243 = vpack.c.b16 %v233, %v232
    %v244 = vpack.c.b16 %v235, %v234
    %v245 = vpack.c.b16 %v237, %v236
    %254 = vmatprep.subr.bf16.mxu0 0
    %255 = vmatpush1.bf16.msra.mxu0 %v245
    %256 = vmatprep.subr.bf16.mxu0 0
    %257 = vmatpush1.bf16.msra.mxu0 %v244
    %258 = vmatprep.subr.bf16.mxu0 0
    %259 = vmatpush1.bf16.msra.mxu0 %v243
    %260 = vmatprep.subr.bf16.mxu0 0
    %261 = vmatpush1.bf16.msra.mxu0 %v242
    %262 = vmatprep.subr.bf16.mxu0 0
    %263 = vmatpush1.bf16.msra.mxu0 %v241
    %264 = vmatprep.subr.bf16.mxu0 0
    %265 = vmatpush1.bf16.msra.mxu0 %v240
    %266 = vmatprep.subr.bf16.mxu0 0
    %267 = vmatpush1.bf16.msra.mxu0 %v239
    %268 = vmatprep.subr.bf16.mxu0 0
    %269 = vmatpush1.bf16.msra.mxu0 %v238
    %270 = vmatprep.subr.bf16.mxu0 0
    %271 = vmatpush2.bf16.msra.mxu0 0
    %272 = vmatprep.subr.bf16.mxu0 0
    %273 = vmatpush2.bf16.msra.mxu0 0
    %274 = vmatprep.subr.bf16.mxu0 0
    %275 = vmatpush2.bf16.msra.mxu0 0
    %276 = vmatprep.subr.bf16.mxu0 0
    %277 = vmatpush2.bf16.msra.mxu0 0
    %278 = vmatprep.subr.bf16.mxu0 0
    %279 = vmatpush2.bf16.msra.mxu0 0
    %280 = vmatprep.subr.bf16.mxu0 0
    %281 = vmatpush2.bf16.msra.mxu0 0
    %282 = vmatprep.subr.bf16.mxu0 0
    %283 = vmatpush2.bf16.msra.mxu0 0
    %284 = vmatprep.subr.bf16.mxu0 0
    %285 = vmatpush2.bf16.msra.mxu0 0
    %286 = vmatprep.mubr.bf16.mxu0 0
    %287 = vmatmul.mubr.bf16.gmra.mxu0 %v199
    %v288 = vpop.f32.mrf.mxu0
    %v289 = vadd.f32 %v204, %v288
    %v290 = vpop.f32.mrf.mxu0
    %v291 = vpop.f32.mrf.mxu0
    %v292 = vadd.f32 %v204, %v291
    %v293 = vpop.f32.mrf.mxu0
    %294 = vdwg.mxu0
    %v295 = vmax.f32 %v289, 0.0
    %v296 = vmax.f32 %v292, 0.0
    %v297 = vld [vmem:[#allocation7] sm:$0xf]
    %v298 = vld [vmem:[#allocation7 + $0x4] sm:$0xf]
    %v299 = vld [vmem:[#allocation7 + $0x8] sm:$0xf]
    %v300 = vld [vmem:[#allocation7 + $0xc] sm:$0xf]
    %v301 = vld [vmem:[#allocation7 + $0x10] sm:$0xf]
    %v302 = vld [vmem:[#allocation7 + $0x14] sm:$0xf]
    %v303 = vld [vmem:[#allocation7 + $0x18] sm:$0xf]
    %v304 = vld [vmem:[#allocation7 + $0x1c] sm:$0xf]
    %v305 = vld [vmem:[#allocation7 + $0x20] sm:$0xf]
    %v306 = vld [vmem:[#allocation7 + $0x24] sm:$0xf]
    %v307 = vld [vmem:[#allocation7 + $0x28] sm:$0xf]
    %v308 = vld [vmem:[#allocation7 + $0x2c] sm:$0xf]
    %v309 = vld [vmem:[#allocation7 + $0x30] sm:$0xf]
    %v310 = vld [vmem:[#allocation7 + $0x34] sm:$0xf]
    %v311 = vld [vmem:[#allocation7 + $0x38] sm:$0xf]
    %v312 = vld [vmem:[#allocation7 + $0x3c] sm:$0xf]
    %v313 = vld [vmem:[%s4] sm:$0x1]
    %v314 = vpack.c.bf16 %v296, %v295
    %v316 = vlaneseq
    %v317 = vshrl.u32 %v316, 7
    %v318 = vsub.s32 0, %v317
    %v319 = vrot.slane %v313, %v318
    %v337 = vunpack.c.l.b16 %v297
    %v338 = vunpack.c.l.b16 %v298
    %v339 = vunpack.c.l.b16 %v299
    %v340 = vunpack.c.l.b16 %v300
    %v341 = vunpack.c.l.b16 %v301
    %v342 = vunpack.c.l.b16 %v302
    %v343 = vunpack.c.l.b16 %v303
    %v344 = vunpack.c.l.b16 %v304
    %v345 = vunpack.c.l.b16 %v305
    %v346 = vunpack.c.l.b16 %v306
    %v347 = vunpack.c.l.b16 %v307
    %v348 = vunpack.c.l.b16 %v308
    %v349 = vunpack.c.l.b16 %v309
    %v350 = vunpack.c.l.b16 %v310
    %v351 = vunpack.c.l.b16 %v311
    %v352 = vunpack.c.l.b16 %v312
    %v353 = vpack.c.b16 %v338, %v337
    %v354 = vpack.c.b16 %v340, %v339
    %v355 = vpack.c.b16 %v342, %v341
    %v356 = vpack.c.b16 %v344, %v343
    %v357 = vpack.c.b16 %v346, %v345
    %v358 = vpack.c.b16 %v348, %v347
    %v359 = vpack.c.b16 %v350, %v349
    %v360 = vpack.c.b16 %v352, %v351
    %369 = vmatprep.subr.bf16.mxu0 0
    %370 = vmatpush1.bf16.msra.mxu0 %v360
    %371 = vmatprep.subr.bf16.mxu0 0
    %372 = vmatpush1.bf16.msra.mxu0 %v359
    %373 = vmatprep.subr.bf16.mxu0 0
    %374 = vmatpush1.bf16.msra.mxu0 %v358
    %375 = vmatprep.subr.bf16.mxu0 0
    %376 = vmatpush1.bf16.msra.mxu0 %v357
    %377 = vmatprep.subr.bf16.mxu0 0
    %378 = vmatpush1.bf16.msra.mxu0 %v356
    %379 = vmatprep.subr.bf16.mxu0 0
    %380 = vmatpush1.bf16.msra.mxu0 %v355
    %381 = vmatprep.subr.bf16.mxu0 0
    %382 = vmatpush1.bf16.msra.mxu0 %v354
    %383 = vmatprep.subr.bf16.mxu0 0
    %384 = vmatpush1.bf16.msra.mxu0 %v353
    %385 = vmatprep.subr.bf16.mxu0 0
    %386 = vmatpush2.bf16.msra.mxu0 0
    %387 = vmatprep.subr.bf16.mxu0 0
    %388 = vmatpush2.bf16.msra.mxu0 0
    %389 = vmatprep.subr.bf16.mxu0 0
    %390 = vmatpush2.bf16.msra.mxu0 0
    %391 = vmatprep.subr.bf16.mxu0 0
    %392 = vmatpush2.bf16.msra.mxu0 0
    %393 = vmatprep.subr.bf16.mxu0 0
    %394 = vmatpush2.bf16.msra.mxu0 0
    %395 = vmatprep.subr.bf16.mxu0 0
    %396 = vmatpush2.bf16.msra.mxu0 0
    %397 = vmatprep.subr.bf16.mxu0 0
    %398 = vmatpush2.bf16.msra.mxu0 0
    %399 = vmatprep.subr.bf16.mxu0 0
    %400 = vmatpush2.bf16.msra.mxu0 0
    %401 = vmatprep.mubr.bf16.mxu0 0
    %402 = vmatmul.mubr.bf16.gmra.mxu0 %v314
    %v403 = vpop.f32.mrf.mxu0
    %v404 = vadd.f32 %v319, %v403
    %v405 = vpop.f32.mrf.mxu0
    %v406 = vpop.f32.mrf.mxu0
    %v407 = vadd.f32 %v319, %v406
    %v408 = vpop.f32.mrf.mxu0
    %409 = vdwg.mxu0
    %v410 = vmax.f32 %v404, 0.0
    %v411 = vmax.f32 %v407, 0.0
    %v412 = vld [vmem:[#allocation8] sm:$0xf]
    %v413 = vld [vmem:[#allocation8 + $0x4] sm:$0xf]
    %v414 = vld [vmem:[#allocation8 + $0x8] sm:$0xf]
    %v415 = vld [vmem:[#allocation8 + $0xc] sm:$0xf]
    %v416 = vld [vmem:[#allocation8 + $0x10] sm:$0xf]
    %v417 = vld [vmem:[#allocation8 + $0x14] sm:$0xf]
    %v418 = vld [vmem:[#allocation8 + $0x18] sm:$0xf]
    %v419 = vld [vmem:[#allocation8 + $0x1c] sm:$0xf]
    %v420 = vld [vmem:[#allocation8 + $0x20] sm:$0xf]
    %v421 = vld [vmem:[#allocation8 + $0x24] sm:$0xf]
    %v422 = vld [vmem:[#allocation8 + $0x28] sm:$0xf]
    %v423 = vld [vmem:[#allocation8 + $0x2c] sm:$0xf]
    %v424 = vld [vmem:[#allocation8 + $0x30] sm:$0xf]
    %v425 = vld [vmem:[#allocation8 + $0x34] sm:$0xf]
    %v426 = vld [vmem:[#allocation8 + $0x38] sm:$0xf]
    %v427 = vld [vmem:[#allocation8 + $0x3c] sm:$0xf]
    %v428 = vld [vmem:[%s6] sm:$0x1]
    %v429 = vpack.c.bf16 %v411, %v410
    %v431 = vlaneseq
    %v432 = vshrl.u32 %v431, 7
    %v433 = vsub.s32 0, %v432
    %v434 = vrot.slane %v428, %v433
    %v452 = vunpack.c.l.b16 %v412
    %v453 = vunpack.c.l.b16 %v413
    %v454 = vunpack.c.l.b16 %v414
    %v455 = vunpack.c.l.b16 %v415
    %v456 = vunpack.c.l.b16 %v416
    %v457 = vunpack.c.l.b16 %v417
    %v458 = vunpack.c.l.b16 %v418
    %v459 = vunpack.c.l.b16 %v419
    %v460 = vunpack.c.l.b16 %v420
    %v461 = vunpack.c.l.b16 %v421
    %v462 = vunpack.c.l.b16 %v422
    %v463 = vunpack.c.l.b16 %v423
    %v464 = vunpack.c.l.b16 %v424
    %v465 = vunpack.c.l.b16 %v425
    %v466 = vunpack.c.l.b16 %v426
    %v467 = vunpack.c.l.b16 %v427
    %v468 = vpack.c.b16 %v453, %v452
    %v469 = vpack.c.b16 %v455, %v454
    %v470 = vpack.c.b16 %v457, %v456
    %v471 = vpack.c.b16 %v459, %v458
    %v472 = vpack.c.b16 %v461, %v460
    %v473 = vpack.c.b16 %v463, %v462
    %v474 = vpack.c.b16 %v465, %v464
    %v475 = vpack.c.b16 %v467, %v466
    %484 = vmatprep.subr.bf16.mxu0 0
    %485 = vmatpush1.bf16.msra.mxu0 %v475
    %486 = vmatprep.subr.bf16.mxu0 0
    %487 = vmatpush1.bf16.msra.mxu0 %v474
    %488 = vmatprep.subr.bf16.mxu0 0
    %489 = vmatpush1.bf16.msra.mxu0 %v473
    %490 = vmatprep.subr.bf16.mxu0 0
    %491 = vmatpush1.bf16.msra.mxu0 %v472
    %492 = vmatprep.subr.bf16.mxu0 0
    %493 = vmatpush1.bf16.msra.mxu0 %v471
    %494 = vmatprep.subr.bf16.mxu0 0
    %495 = vmatpush1.bf16.msra.mxu0 %v470
    %496 = vmatprep.subr.bf16.mxu0 0
    %497 = vmatpush1.bf16.msra.mxu0 %v469
    %498 = vmatprep.subr.bf16.mxu0 0
    %499 = vmatpush1.bf16.msra.mxu0 %v468
    %500 = vmatprep.subr.bf16.mxu0 0
    %501 = vmatpush2.bf16.msra.mxu0 0
    %502 = vmatprep.subr.bf16.mxu0 0
    %503 = vmatpush2.bf16.msra.mxu0 0
    %504 = vmatprep.subr.bf16.mxu0 0
    %505 = vmatpush2.bf16.msra.mxu0 0
    %506 = vmatprep.subr.bf16.mxu0 0
    %507 = vmatpush2.bf16.msra.mxu0 0
    %508 = vmatprep.subr.bf16.mxu0 0
    %509 = vmatpush2.bf16.msra.mxu0 0
    %510 = vmatprep.subr.bf16.mxu0 0
    %511 = vmatpush2.bf16.msra.mxu0 0
    %512 = vmatprep.subr.bf16.mxu0 0
    %513 = vmatpush2.bf16.msra.mxu0 0
    %514 = vmatprep.subr.bf16.mxu0 0
    %515 = vmatpush2.bf16.msra.mxu0 0
    %516 = vmatprep.mubr.bf16.mxu0 0
    %517 = vmatmul.mubr.bf16.gmra.mxu0 %v429
    %v518 = vpop.f32.mrf.mxu0
    %v519 = vadd.f32 %v434, %v518
    %v520 = vpop.f32.mrf.mxu0
    %v521 = vpop.f32.mrf.mxu0
    %v522 = vadd.f32 %v434, %v521
    %v523 = vpop.f32.mrf.mxu0
    %524 = vdwg.mxu0
    %v525 = vmax.f32 %v519, 0.0
    %v526 = vmax.f32 %v522, 0.0
    %v527 = vld [vmem:[#allocation10] sm:$0xf]
    %v528 = vld [vmem:[#allocation10 + $0x4] sm:$0xf]
    %v529 = vld [vmem:[#allocation10 + $0x8] sm:$0xf]
    %v530 = vld [vmem:[#allocation10 + $0xc] sm:$0xf]
    %v531 = vld [vmem:[#allocation10 + $0x10] sm:$0xf]
    %v532 = vld [vmem:[#allocation10 + $0x14] sm:$0xf]
    %v533 = vld [vmem:[#allocation10 + $0x18] sm:$0xf]
    %v534 = vld [vmem:[#allocation10 + $0x1c] sm:$0xf]
    %v535 = vld [vmem:[#allocation10 + $0x20] sm:$0xf]
    %v536 = vld [vmem:[#allocation10 + $0x24] sm:$0xf]
    %v537 = vld [vmem:[#allocation10 + $0x28] sm:$0xf]
    %v538 = vld [vmem:[#allocation10 + $0x2c] sm:$0xf]
    %v539 = vld [vmem:[#allocation10 + $0x30] sm:$0xf]
    %v540 = vld [vmem:[#allocation10 + $0x34] sm:$0xf]
    %v541 = vld [vmem:[#allocation10 + $0x38] sm:$0xf]
    %v542 = vld [vmem:[#allocation10 + $0x3c] sm:$0xf]
    %v543 = vld [vmem:[%s8] sm:$0x1]
    %v544 = vpack.c.bf16 %v526, %v525
    %v546 = vlaneseq
    %v547 = vshrl.u32 %v546, 7
    %v548 = vsub.s32 0, %v547
    %v549 = vrot.slane %v543, %v548
    %v567 = vunpack.c.l.b16 %v527
    %v568 = vunpack.c.l.b16 %v528
    %v569 = vunpack.c.l.b16 %v529
    %v570 = vunpack.c.l.b16 %v530
    %v571 = vunpack.c.l.b16 %v531
    %v572 = vunpack.c.l.b16 %v532
    %v573 = vunpack.c.l.b16 %v533
    %v574 = vunpack.c.l.b16 %v534
    %v575 = vunpack.c.l.b16 %v535
    %v576 = vunpack.c.l.b16 %v536
    %v577 = vunpack.c.l.b16 %v537
    %v578 = vunpack.c.l.b16 %v538
    %v579 = vunpack.c.l.b16 %v539
    %v580 = vunpack.c.l.b16 %v540
    %v581 = vunpack.c.l.b16 %v541
    %v582 = vunpack.c.l.b16 %v542
    %v583 = vpack.c.b16 %v568, %v567
    %v584 = vpack.c.b16 %v570, %v569
    %v585 = vpack.c.b16 %v572, %v571
    %v586 = vpack.c.b16 %v574, %v573
    %v587 = vpack.c.b16 %v576, %v575
    %v588 = vpack.c.b16 %v578, %v577
    %v589 = vpack.c.b16 %v580, %v579
    %v590 = vpack.c.b16 %v582, %v581
    %599 = vmatprep.subr.bf16.mxu0 0
    %600 = vmatpush1.bf16.msra.mxu0 %v590
    %601 = vmatprep.subr.bf16.mxu0 0
    %602 = vmatpush1.bf16.msra.mxu0 %v589
    %603 = vmatprep.subr.bf16.mxu0 0
    %604 = vmatpush1.bf16.msra.mxu0 %v588
    %605 = vmatprep.subr.bf16.mxu0 0
    %606 = vmatpush1.bf16.msra.mxu0 %v587
    %607 = vmatprep.subr.bf16.mxu0 0
    %608 = vmatpush1.bf16.msra.mxu0 %v586
    %609 = vmatprep.subr.bf16.mxu0 0
    %610 = vmatpush1.bf16.msra.mxu0 %v585
    %611 = vmatprep.subr.bf16.mxu0 0
    %612 = vmatpush1.bf16.msra.mxu0 %v584
    %613 = vmatprep.subr.bf16.mxu0 0
    %614 = vmatpush1.bf16.msra.mxu0 %v583
    %615 = vmatprep.subr.bf16.mxu0 0
    %616 = vmatpush2.bf16.msra.mxu0 0
    %617 = vmatprep.subr.bf16.mxu0 0
    %618 = vmatpush2.bf16.msra.mxu0 0
    %619 = vmatprep.subr.bf16.mxu0 0
    %620 = vmatpush2.bf16.msra.mxu0 0
    %621 = vmatprep.subr.bf16.mxu0 0
    %622 = vmatpush2.bf16.msra.mxu0 0
    %623 = vmatprep.subr.bf16.mxu0 0
    %624 = vmatpush2.bf16.msra.mxu0 0
    %625 = vmatprep.subr.bf16.mxu0 0
    %626 = vmatpush2.bf16.msra.mxu0 0
    %627 = vmatprep.subr.bf16.mxu0 0
    %628 = vmatpush2.bf16.msra.mxu0 0
    %629 = vmatprep.subr.bf16.mxu0 0
    %630 = vmatpush2.bf16.msra.mxu0 0
    %631 = vmatprep.mubr.bf16.mxu0 0
    %632 = vmatmul.mubr.bf16.gmra.mxu0 %v544
    %v633 = vpop.f32.mrf.mxu0
    %v634 = vadd.f32 %v549, %v633
    %v635 = vpop.f32.mrf.mxu0
    %v636 = vpop.f32.mrf.mxu0
    %v637 = vadd.f32 %v549, %v636
    %v638 = vpop.f32.mrf.mxu0
    %639 = vdwg.mxu0
    %v640 = vmax.f32 %v634, 0.0
    %v641 = vmax.f32 %v637, 0.0
    %v642 = vld [vmem:[#allocation11] sm:$0xf]
    %v643 = vld [vmem:[#allocation11 + $0x4] sm:$0xf]
    %v644 = vld [vmem:[#allocation11 + $0x8] sm:$0xf]
    %v645 = vld [vmem:[#allocation11 + $0xc] sm:$0xf]
    %v646 = vld [vmem:[#allocation11 + $0x10] sm:$0xf]
    %v647 = vld [vmem:[#allocation11 + $0x14] sm:$0xf]
    %v648 = vld [vmem:[#allocation11 + $0x18] sm:$0xf]
    %v649 = vld [vmem:[#allocation11 + $0x1c] sm:$0xf]
    %v650 = vld [vmem:[#allocation11 + $0x20] sm:$0xf]
    %v651 = vld [vmem:[#allocation11 + $0x24] sm:$0xf]
    %v652 = vld [vmem:[#allocation11 + $0x28] sm:$0xf]
    %v653 = vld [vmem:[#allocation11 + $0x2c] sm:$0xf]
    %v654 = vld [vmem:[#allocation11 + $0x30] sm:$0xf]
    %v655 = vld [vmem:[#allocation11 + $0x34] sm:$0xf]
    %v656 = vld [vmem:[#allocation11 + $0x38] sm:$0xf]
    %v657 = vld [vmem:[#allocation11 + $0x3c] sm:$0xf]
    %v658 = vld [vmem:[%s10] sm:$0x1]
    %v659 = vpack.c.bf16 %v641, %v640
    %v661 = vlaneseq
    %v662 = vshrl.u32 %v661, 7
    %v663 = vsub.s32 0, %v662
    %v664 = vrot.slane %v658, %v663
    %v682 = vunpack.c.l.b16 %v642
    %v683 = vunpack.c.l.b16 %v643
    %v684 = vunpack.c.l.b16 %v644
    %v685 = vunpack.c.l.b16 %v645
    %v686 = vunpack.c.l.b16 %v646
    %v687 = vunpack.c.l.b16 %v647
    %v688 = vunpack.c.l.b16 %v648
    %v689 = vunpack.c.l.b16 %v649
    %v690 = vunpack.c.l.b16 %v650
    %v691 = vunpack.c.l.b16 %v651
    %v692 = vunpack.c.l.b16 %v652
    %v693 = vunpack.c.l.b16 %v653
    %v694 = vunpack.c.l.b16 %v654
    %v695 = vunpack.c.l.b16 %v655
    %v696 = vunpack.c.l.b16 %v656
    %v697 = vunpack.c.l.b16 %v657
    %v698 = vpack.c.b16 %v683, %v682
    %v699 = vpack.c.b16 %v685, %v684
    %v700 = vpack.c.b16 %v687, %v686
    %v701 = vpack.c.b16 %v689, %v688
    %v702 = vpack.c.b16 %v691, %v690
    %v703 = vpack.c.b16 %v693, %v692
    %v704 = vpack.c.b16 %v695, %v694
    %v705 = vpack.c.b16 %v697, %v696
    %714 = vmatprep.subr.bf16.mxu0 0
    %715 = vmatpush1.bf16.msra.mxu0 %v705
    %716 = vmatprep.subr.bf16.mxu0 0
    %717 = vmatpush1.bf16.msra.mxu0 %v704
    %718 = vmatprep.subr.bf16.mxu0 0
    %719 = vmatpush1.bf16.msra.mxu0 %v703
    %720 = vmatprep.subr.bf16.mxu0 0
    %721 = vmatpush1.bf16.msra.mxu0 %v702
    %722 = vmatprep.subr.bf16.mxu0 0
    %723 = vmatpush1.bf16.msra.mxu0 %v701
    %724 = vmatprep.subr.bf16.mxu0 0
    %725 = vmatpush1.bf16.msra.mxu0 %v700
    %726 = vmatprep.subr.bf16.mxu0 0
    %727 = vmatpush1.bf16.msra.mxu0 %v699
    %728 = vmatprep.subr.bf16.mxu0 0
    %729 = vmatpush1.bf16.msra.mxu0 %v698
    %730 = vmatprep.subr.bf16.mxu0 0
    %731 = vmatpush2.bf16.msra.mxu0 0
    %732 = vmatprep.subr.bf16.mxu0 0
    %733 = vmatpush2.bf16.msra.mxu0 0
    %734 = vmatprep.subr.bf16.mxu0 0
    %735 = vmatpush2.bf16.msra.mxu0 0
    %736 = vmatprep.subr.bf16.mxu0 0
    %737 = vmatpush2.bf16.msra.mxu0 0
    %738 = vmatprep.subr.bf16.mxu0 0
    %739 = vmatpush2.bf16.msra.mxu0 0
    %740 = vmatprep.subr.bf16.mxu0 0
    %741 = vmatpush2.bf16.msra.mxu0 0
    %742 = vmatprep.subr.bf16.mxu0 0
    %743 = vmatpush2.bf16.msra.mxu0 0
    %744 = vmatprep.subr.bf16.mxu0 0
    %745 = vmatpush2.bf16.msra.mxu0 0
    %746 = vmatprep.mubr.bf16.mxu0 0
    %747 = vmatmul.mubr.bf16.gmra.mxu0 %v659
    %v748 = vpop.f32.mrf.mxu0
    %v749 = vadd.f32 %v664, %v748
    %v750 = vpop.f32.mrf.mxu0
    %v751 = vpop.f32.mrf.mxu0
    %v752 = vadd.f32 %v664, %v751
    %v753 = vpop.f32.mrf.mxu0
    %754 = vdwg.mxu0
    %v755 = vmax.f32 %v749, 0.0
    %v756 = vmax.f32 %v752, 0.0
    %v757 = vld [vmem:[#allocation13] sm:$0xf]
    %v758 = vld [vmem:[#allocation13 + $0x4] sm:$0xf]
    %v759 = vld [vmem:[#allocation13 + $0x8] sm:$0xf]
    %v760 = vld [vmem:[#allocation13 + $0xc] sm:$0xf]
    %v761 = vld [vmem:[#allocation13 + $0x10] sm:$0xf]
    %v762 = vld [vmem:[#allocation13 + $0x14] sm:$0xf]
    %v763 = vld [vmem:[#allocation13 + $0x18] sm:$0xf]
    %v764 = vld [vmem:[#allocation13 + $0x1c] sm:$0xf]
    %v765 = vld [vmem:[#allocation13 + $0x20] sm:$0xf]
    %v766 = vld [vmem:[#allocation13 + $0x24] sm:$0xf]
    %v767 = vld [vmem:[#allocation13 + $0x28] sm:$0xf]
    %v768 = vld [vmem:[#allocation13 + $0x2c] sm:$0xf]
    %v769 = vld [vmem:[#allocation13 + $0x30] sm:$0xf]
    %v770 = vld [vmem:[#allocation13 + $0x34] sm:$0xf]
    %v771 = vld [vmem:[#allocation13 + $0x38] sm:$0xf]
    %v772 = vld [vmem:[#allocation13 + $0x3c] sm:$0xf]
    %v773 = vld [vmem:[%s12] sm:$0x1]
    %v774 = vpack.c.bf16 %v756, %v755
    %v776 = vlaneseq
    %v777 = vshrl.u32 %v776, 7
    %v778 = vsub.s32 0, %v777
    %v779 = vrot.slane %v773, %v778
    %v797 = vunpack.c.l.b16 %v757
    %v798 = vunpack.c.l.b16 %v758
    %v799 = vunpack.c.l.b16 %v759
    %v800 = vunpack.c.l.b16 %v760
    %v801 = vunpack.c.l.b16 %v761
    %v802 = vunpack.c.l.b16 %v762
    %v803 = vunpack.c.l.b16 %v763
    %v804 = vunpack.c.l.b16 %v764
    %v805 = vunpack.c.l.b16 %v765
    %v806 = vunpack.c.l.b16 %v766
    %v807 = vunpack.c.l.b16 %v767
    %v808 = vunpack.c.l.b16 %v768
    %v809 = vunpack.c.l.b16 %v769
    %v810 = vunpack.c.l.b16 %v770
    %v811 = vunpack.c.l.b16 %v771
    %v812 = vunpack.c.l.b16 %v772
    %v813 = vpack.c.b16 %v798, %v797
    %v814 = vpack.c.b16 %v800, %v799
    %v815 = vpack.c.b16 %v802, %v801
    %v816 = vpack.c.b16 %v804, %v803
    %v817 = vpack.c.b16 %v806, %v805
    %v818 = vpack.c.b16 %v808, %v807
    %v819 = vpack.c.b16 %v810, %v809
    %v820 = vpack.c.b16 %v812, %v811
    %829 = vmatprep.subr.bf16.mxu0 0
    %830 = vmatpush1.bf16.msra.mxu0 %v820
    %831 = vmatprep.subr.bf16.mxu0 0
    %832 = vmatpush1.bf16.msra.mxu0 %v819
    %833 = vmatprep.subr.bf16.mxu0 0
    %834 = vmatpush1.bf16.msra.mxu0 %v818
    %835 = vmatprep.subr.bf16.mxu0 0
    %836 = vmatpush1.bf16.msra.mxu0 %v817
    %837 = vmatprep.subr.bf16.mxu0 0
    %838 = vmatpush1.bf16.msra.mxu0 %v816
    %839 = vmatprep.subr.bf16.mxu0 0
    %840 = vmatpush1.bf16.msra.mxu0 %v815
    %841 = vmatprep.subr.bf16.mxu0 0
    %842 = vmatpush1.bf16.msra.mxu0 %v814
    %843 = vmatprep.subr.bf16.mxu0 0
    %844 = vmatpush1.bf16.msra.mxu0 %v813
    %845 = vmatprep.subr.bf16.mxu0 0
    %846 = vmatpush2.bf16.msra.mxu0 0
    %847 = vmatprep.subr.bf16.mxu0 0
    %848 = vmatpush2.bf16.msra.mxu0 0
    %849 = vmatprep.subr.bf16.mxu0 0
    %850 = vmatpush2.bf16.msra.mxu0 0
    %851 = vmatprep.subr.bf16.mxu0 0
    %852 = vmatpush2.bf16.msra.mxu0 0
    %853 = vmatprep.subr.bf16.mxu0 0
    %854 = vmatpush2.bf16.msra.mxu0 0
    %855 = vmatprep.subr.bf16.mxu0 0
    %856 = vmatpush2.bf16.msra.mxu0 0
    %857 = vmatprep.subr.bf16.mxu0 0
    %858 = vmatpush2.bf16.msra.mxu0 0
    %859 = vmatprep.subr.bf16.mxu0 0
    %860 = vmatpush2.bf16.msra.mxu0 0
    %861 = vmatprep.mubr.bf16.mxu0 0
    %862 = vmatmul.mubr.bf16.gmra.mxu0 %v774
    %v863 = vpop.f32.mrf.mxu0
    %v864 = vadd.f32 %v779, %v863
    %v865 = vpop.f32.mrf.mxu0
    %v866 = vpop.f32.mrf.mxu0
    %v867 = vadd.f32 %v779, %v866
    %v868 = vpop.f32.mrf.mxu0
    %869 = vdwg.mxu0
    %v870 = vmax.f32 %v864, 0.0
    %v871 = vmax.f32 %v867, 0.0
    %v872 = vld [vmem:[#allocation14] sm:$0xf]
    %v873 = vld [vmem:[#allocation14 + $0x4] sm:$0xf]
    %v874 = vld [vmem:[#allocation14 + $0x8] sm:$0xf]
    %v875 = vld [vmem:[#allocation14 + $0xc] sm:$0xf]
    %v876 = vld [vmem:[#allocation14 + $0x10] sm:$0xf]
    %v877 = vld [vmem:[#allocation14 + $0x14] sm:$0xf]
    %v878 = vld [vmem:[#allocation14 + $0x18] sm:$0xf]
    %v879 = vld [vmem:[#allocation14 + $0x1c] sm:$0xf]
    %v880 = vld [vmem:[#allocation14 + $0x20] sm:$0xf]
    %v881 = vld [vmem:[#allocation14 + $0x24] sm:$0xf]
    %v882 = vld [vmem:[#allocation14 + $0x28] sm:$0xf]
    %v883 = vld [vmem:[#allocation14 + $0x2c] sm:$0xf]
    %v884 = vld [vmem:[#allocation14 + $0x30] sm:$0xf]
    %v885 = vld [vmem:[#allocation14 + $0x34] sm:$0xf]
    %v886 = vld [vmem:[#allocation14 + $0x38] sm:$0xf]
    %v887 = vld [vmem:[#allocation14 + $0x3c] sm:$0xf]
    %v888 = vld [vmem:[%s14] sm:$0x1]
    %v889 = vpack.c.bf16 %v871, %v870
    %v891 = vlaneseq
    %v892 = vshrl.u32 %v891, 7
    %v893 = vsub.s32 0, %v892
    %v894 = vrot.slane %v888, %v893
    %v912 = vunpack.c.l.b16 %v872
    %v913 = vunpack.c.l.b16 %v873
    %v914 = vunpack.c.l.b16 %v874
    %v915 = vunpack.c.l.b16 %v875
    %v916 = vunpack.c.l.b16 %v876
    %v917 = vunpack.c.l.b16 %v877
    %v918 = vunpack.c.l.b16 %v878
    %v919 = vunpack.c.l.b16 %v879
    %v920 = vunpack.c.l.b16 %v880
    %v921 = vunpack.c.l.b16 %v881
    %v922 = vunpack.c.l.b16 %v882
    %v923 = vunpack.c.l.b16 %v883
    %v924 = vunpack.c.l.b16 %v884
    %v925 = vunpack.c.l.b16 %v885
    %v926 = vunpack.c.l.b16 %v886
    %v927 = vunpack.c.l.b16 %v887
    %v928 = vpack.c.b16 %v913, %v912
    %v929 = vpack.c.b16 %v915, %v914
    %v930 = vpack.c.b16 %v917, %v916
    %v931 = vpack.c.b16 %v919, %v918
    %v932 = vpack.c.b16 %v921, %v920
    %v933 = vpack.c.b16 %v923, %v922
    %v934 = vpack.c.b16 %v925, %v924
    %v935 = vpack.c.b16 %v927, %v926
    %944 = vmatprep.subr.bf16.mxu0 0
    %945 = vmatpush1.bf16.msra.mxu0 %v935
    %946 = vmatprep.subr.bf16.mxu0 0
    %947 = vmatpush1.bf16.msra.mxu0 %v934
    %948 = vmatprep.subr.bf16.mxu0 0
    %949 = vmatpush1.bf16.msra.mxu0 %v933
    %950 = vmatprep.subr.bf16.mxu0 0
    %951 = vmatpush1.bf16.msra.mxu0 %v932
    %952 = vmatprep.subr.bf16.mxu0 0
    %953 = vmatpush1.bf16.msra.mxu0 %v931
    %954 = vmatprep.subr.bf16.mxu0 0
    %955 = vmatpush1.bf16.msra.mxu0 %v930
    %956 = vmatprep.subr.bf16.mxu0 0
    %957 = vmatpush1.bf16.msra.mxu0 %v929
    %958 = vmatprep.subr.bf16.mxu0 0
    %959 = vmatpush1.bf16.msra.mxu0 %v928
    %960 = vmatprep.subr.bf16.mxu0 0
    %961 = vmatpush2.bf16.msra.mxu0 0
    %962 = vmatprep.subr.bf16.mxu0 0
    %963 = vmatpush2.bf16.msra.mxu0 0
    %964 = vmatprep.subr.bf16.mxu0 0
    %965 = vmatpush2.bf16.msra.mxu0 0
    %966 = vmatprep.subr.bf16.mxu0 0
    %967 = vmatpush2.bf16.msra.mxu0 0
    %968 = vmatprep.subr.bf16.mxu0 0
    %969 = vmatpush2.bf16.msra.mxu0 0
    %970 = vmatprep.subr.bf16.mxu0 0
    %971 = vmatpush2.bf16.msra.mxu0 0
    %972 = vmatprep.subr.bf16.mxu0 0
    %973 = vmatpush2.bf16.msra.mxu0 0
    %974 = vmatprep.subr.bf16.mxu0 0
    %975 = vmatpush2.bf16.msra.mxu0 0
    %976 = vmatprep.mubr.bf16.mxu0 0
    %977 = vmatmul.mubr.bf16.gmra.mxu0 %v889
    %v978 = vpop.f32.mrf.mxu0
    %v979 = vadd.f32 %v894, %v978
    %v980 = vpop.f32.mrf.mxu0
    %v981 = vpop.f32.mrf.mxu0
    %v982 = vadd.f32 %v894, %v981
    %v983 = vpop.f32.mrf.mxu0
    %984 = vdwg.mxu0
    %v985 = vmax.f32 %v979, 0.0
    %v986 = vmax.f32 %v982, 0.0
    %v987 = vld [vmem:[#allocation16] sm:$0xf]
    %v988 = vld [vmem:[#allocation16 + $0x4] sm:$0xf]
    %v989 = vld [vmem:[#allocation16 + $0x8] sm:$0xf]
    %v990 = vld [vmem:[#allocation16 + $0xc] sm:$0xf]
    %v991 = vld [vmem:[#allocation16 + $0x10] sm:$0xf]
    %v992 = vld [vmem:[#allocation16 + $0x14] sm:$0xf]
    %v993 = vld [vmem:[#allocation16 + $0x18] sm:$0xf]
    %v994 = vld [vmem:[#allocation16 + $0x1c] sm:$0xf]
    %v995 = vld [vmem:[#allocation16 + $0x20] sm:$0xf]
    %v996 = vld [vmem:[#allocation16 + $0x24] sm:$0xf]
    %v997 = vld [vmem:[#allocation16 + $0x28] sm:$0xf]
    %v998 = vld [vmem:[#allocation16 + $0x2c] sm:$0xf]
    %v999 = vld [vmem:[#allocation16 + $0x30] sm:$0xf]
    %v1000 = vld [vmem:[#allocation16 + $0x34] sm:$0xf]
    %v1001 = vld [vmem:[#allocation16 + $0x38] sm:$0xf]
    %v1002 = vld [vmem:[#allocation16 + $0x3c] sm:$0xf]
    %v1003 = vld [vmem:[%s16] sm:$0x1]
    %v1004 = vpack.c.bf16 %v986, %v985
    %v1006 = vlaneseq
    %v1007 = vshrl.u32 %v1006, 7
    %v1008 = vsub.s32 0, %v1007
    %v1009 = vrot.slane %v1003, %v1008
    %v1027 = vunpack.c.l.b16 %v987
    %v1028 = vunpack.c.l.b16 %v988
    %v1029 = vunpack.c.l.b16 %v989
    %v1030 = vunpack.c.l.b16 %v990
    %v1031 = vunpack.c.l.b16 %v991
    %v1032 = vunpack.c.l.b16 %v992
    %v1033 = vunpack.c.l.b16 %v993
    %v1034 = vunpack.c.l.b16 %v994
    %v1035 = vunpack.c.l.b16 %v995
    %v1036 = vunpack.c.l.b16 %v996
    %v1037 = vunpack.c.l.b16 %v997
    %v1038 = vunpack.c.l.b16 %v998
    %v1039 = vunpack.c.l.b16 %v999
    %v1040 = vunpack.c.l.b16 %v1000
    %v1041 = vunpack.c.l.b16 %v1001
    %v1042 = vunpack.c.l.b16 %v1002
    %v1043 = vpack.c.b16 %v1028, %v1027
    %v1044 = vpack.c.b16 %v1030, %v1029
    %v1045 = vpack.c.b16 %v1032, %v1031
    %v1046 = vpack.c.b16 %v1034, %v1033
    %v1047 = vpack.c.b16 %v1036, %v1035
    %v1048 = vpack.c.b16 %v1038, %v1037
    %v1049 = vpack.c.b16 %v1040, %v1039
    %v1050 = vpack.c.b16 %v1042, %v1041
    %1059 = vmatprep.subr.bf16.mxu0 0
    %1060 = vmatpush1.bf16.msra.mxu0 %v1050
    %1061 = vmatprep.subr.bf16.mxu0 0
    %1062 = vmatpush1.bf16.msra.mxu0 %v1049
    %1063 = vmatprep.subr.bf16.mxu0 0
    %1064 = vmatpush1.bf16.msra.mxu0 %v1048
    %1065 = vmatprep.subr.bf16.mxu0 0
    %1066 = vmatpush1.bf16.msra.mxu0 %v1047
    %1067 = vmatprep.subr.bf16.mxu0 0
    %1068 = vmatpush1.bf16.msra.mxu0 %v1046
    %1069 = vmatprep.subr.bf16.mxu0 0
    %1070 = vmatpush1.bf16.msra.mxu0 %v1045
    %1071 = vmatprep.subr.bf16.mxu0 0
    %1072 = vmatpush1.bf16.msra.mxu0 %v1044
    %1073 = vmatprep.subr.bf16.mxu0 0
    %1074 = vmatpush1.bf16.msra.mxu0 %v1043
    %1075 = vmatprep.subr.bf16.mxu0 0
    %1076 = vmatpush2.bf16.msra.mxu0 0
    %1077 = vmatprep.subr.bf16.mxu0 0
    %1078 = vmatpush2.bf16.msra.mxu0 0
    %1079 = vmatprep.subr.bf16.mxu0 0
    %1080 = vmatpush2.bf16.msra.mxu0 0
    %1081 = vmatprep.subr.bf16.mxu0 0
    %1082 = vmatpush2.bf16.msra.mxu0 0
    %1083 = vmatprep.subr.bf16.mxu0 0
    %1084 = vmatpush2.bf16.msra.mxu0 0
    %1085 = vmatprep.subr.bf16.mxu0 0
    %1086 = vmatpush2.bf16.msra.mxu0 0
    %1087 = vmatprep.subr.bf16.mxu0 0
    %1088 = vmatpush2.bf16.msra.mxu0 0
    %1089 = vmatprep.subr.bf16.mxu0 0
    %1090 = vmatpush2.bf16.msra.mxu0 0
    %1091 = vmatprep.mubr.bf16.mxu0 0
    %1092 = vmatmul.mubr.bf16.gmra.mxu0 %v1004
    %v1093 = vpop.f32.mrf.mxu0
    %v1094 = vadd.f32 %v1009, %v1093
    %v1095 = vpop.f32.mrf.mxu0
    %v1096 = vpop.f32.mrf.mxu0
    %v1097 = vadd.f32 %v1009, %v1096
    %v1098 = vpop.f32.mrf.mxu0
    %1099 = vdwg.mxu0
    %1100 = vst [vmem:[#allocation17] sm:$0xff] %v1094
    %1101 = vst [vmem:[#allocation17 + $0x8] sm:$0xff] %v1097
    // Predicated region
    $region106: #{tpu_custom_call.1} parent=1 // pred_check
      _
    $region107: #{tpu_custom_call.1} parent=1 // pred_check_branch
      %1103 = sbr.rel (0) target = $region109
    $region108: #{tpu_custom_call.1} parent=1 // pred_region
      %s1105 = ssub.s32 256, 256
      %1106 = vsyncadd [#allocation4], %s1105
      %s1107 = sshll.u32 [#allocation17], 4
      %s1108 = int_to_ptr.vmem [resolvable:$true] %s1107
      %1113 = dma.vmem_to_hbm [thread:$0]  %s1108, 256, %s17, [#allocation4], 128, 128, 8
    $region109: #{tpu_custom_call.1} parent=1 // pred_fallthru
      _
    // Predicated region
    $region110: #{tpu_custom_call.1} parent=1 // pred_check
      _
    $region111: #{tpu_custom_call.1} parent=1 // pred_check_branch
      %1115 = sbr.rel (0) target = $region113
    $region112: #{tpu_custom_call.1} parent=1 // pred_region
      %1116 = dma.done [#allocation4], 256
    $region113: #{tpu_custom_call.1} parent=1 // pred_fallthru
      _
    %1117 = vsyncpa [#allocation3], 1
    %1118 = vsyncpa [#allocation6], 1
    %1119 = vsyncpa [#allocation9], 1
    %1120 = vsyncpa [#allocation12], 1
    %1121 = vsyncpa [#allocation15], 1
    %1122 = vsyncpa [#allocation4], 1

</llo_original>
